<compile_context>
chip_gen: v7x
topology: tpu7x:2x2x1
jax: 0.10.0
libtpu: 0.0.40
codegen_flags: <defaults>
</compile_context>

<pallas_src>
import functools
from typing import NamedTuple

import jax
import jax.numpy as jnp
from jax.experimental import pallas as pl
from jax.experimental.pallas import tpu as pltpu

LANE = 128   # lane width (final projection + slab are lane-padded to this)
SUB = 8      # sublane alignment for slab row offsets / gather rows


class CriticMeta(NamedTuple):
    num_in: int
    emb: int
    num_gnns: int
    eps: float
    compute_dtype: type   # hashable (e.g. jnp.float32 / jnp.bfloat16)


def _round_up(v, m):
    return ((v + m - 1) // m) * m


def _slab_layout(num_in, emb, num_gnns):
    """Row layout of the packed parameter slab.  Every entry starts at a
    sublane-aligned row offset; its data occupies the first `cols` lanes."""
    layout = {}
    off = 0

    def add(name, rows, cols):
        nonlocal off
        layout[name] = (off, rows, cols)
        off += _round_up(rows, SUB)

    add("embed_w", num_in, emb)
    add("embed_b", 1, emb)
    for i in range(num_gnns):
        in_dim = emb if i == 0 else 2 * emb
        add(f"w1_{i}", in_dim, emb)
        add(f"b1_{i}", 1, emb)
        add(f"w2_{i}", emb, emb)
        add(f"b2_{i}", 1, emb)
    add("out_w", emb, LANE)   # composed out-MLP weight, lane-padded
    add("out_b", 1, LANE)     # composed out-MLP bias, lane-padded
    cols = _round_up(max(emb, LANE), LANE)
    return layout, off, cols


# ----------------------------------------------------------------------------
# Fused Pallas kernel: whole critic forward in one launch
# ----------------------------------------------------------------------------

def _critic_kernel(x_ref, adj_ref, idx_ref, slab_ref, o_ref, *, meta):
    num_in, emb, num_gnns, eps, cd = meta
    layout, _, _ = _slab_layout(num_in, emb, num_gnns)

    def w(name):
        off, r, c = layout[name]
        return slab_ref[off:off + r, 0:c]        # static VMEM view -> sub-block load

    def mm(a, b):
        return jnp.dot(a.astype(cd), b.astype(cd),
                       preferred_element_type=jnp.float32)

    n = x_ref.shape[0]
    x = x_ref[...]

    # Fold the GIN (1+eps) self-term into the adjacency once, in-kernel
    # (iota + compare on otherwise-idle VPU slots; no per-call XLA op).
    ri = jax.lax.broadcasted_iota(jnp.int32, (n, n), 0)
    ci = jax.lax.broadcasted_iota(jnp.int32, (n, n), 1)
    eye = (ri == ci).astype(jnp.float32)
    adj_hat = (adj_ref[...].astype(jnp.float32) + (1.0 + eps) * eye).astype(cd)

    x_in = mm(x, w("embed_w")) + w("embed_b")                # [N, E]
    agg_xin = mm(adj_hat, x_in)                              # aggregated x_in (reused by all layers)

    h = None
    for i in range(num_gnns):
        if i == 0:
            pre = mm(agg_xin, w("w1_0")) + w("b1_0")
        else:
            # Aggregation distributes over the concat:
            #   adj_hat @ cat([x_in, h]) == cat([adj_hat @ x_in, adj_hat @ h])
            # 2E <= 128 lanes here, so one K=2E matmul beats split-W1.
            # TODO(synk): if 2*emb >> 128, switch back to the split-W1 form.
            agg_h = mm(adj_hat, h)
            cat = jnp.concatenate([agg_xin, agg_h], axis=1)  # [N, 2E]
            pre = mm(cat, w(f"w1_{i}")) + w(f"b1_{i}")
        hid = jnp.maximum(pre, 0.0)                          # ReLU epilogue in f32 (VPU)
        h = mm(hid, w(f"w2_{i}")) + w(f"b2_{i}")             # [N, E]

    # Center-node gather: one-hot selector built in-kernel from int32 indices
    # (iota + compare), so no [C, N] one-hot or gather op ever touches HBM.
    # NOTE: indices >= N silently select nothing (zero row) -- no bounds check.
    c_pad = idx_ref.shape[0]
    lane = jax.lax.broadcasted_iota(jnp.int32, (c_pad, n), 1)
    sel = (lane == idx_ref[...]).astype(cd)                  # [C_pad, N]
    hs = mm(sel, h)                                          # [C_pad, E]

    # Out MLP (activation-free Linear stack) was composed offline into one
    # lane-padded affine map -> single matmul, single (C_pad, 128) dense store.
    out = mm(hs, w("out_w")) + w("out_b")                    # [C_pad, 128]
    o_ref[...] = out.astype(o_ref.dtype)


# ----------------------------------------------------------------------------
# Parameter init (deterministic, PyTorch nn.Linear-style uniform)
# ----------------------------------------------------------------------------

def _init_linear(key, fan_in, fan_out, dtype=jnp.float32):
    kw, kb = jax.random.split(key)
    bound = 1.0 / jnp.sqrt(jnp.asarray(fan_in, dtype))
    w = jax.random.uniform(kw, (fan_in, fan_out), dtype, -bound, bound)
    b = jax.random.uniform(kb, (fan_out,), dtype, -bound, bound)
    return {"w": w, "b": b}


def init_critic_params(key, num_in_features, num_embedding, num_GNNs,
                       num_out_layers):
    keys = jax.random.split(key, 1 + 2 * num_GNNs + num_out_layers)
    params = {"embed": _init_linear(keys[0], num_in_features, num_embedding)}

    gnn = []
    for i in range(num_GNNs):
        in_dim = num_embedding if i == 0 else num_embedding * 2
        lin1 = _init_linear(keys[1 + 2 * i], in_dim, num_embedding)
        lin2 = _init_linear(keys[2 + 2 * i], num_embedding, num_embedding)
        gnn.append({"lin1": lin1, "lin2": lin2})
    params["gnn"] = gnn

    out = []
    for i in range(num_out_layers):
        out_dim = 1 if i == num_out_layers - 1 else num_embedding
        out.append(_init_linear(keys[1 + 2 * num_GNNs + i],
                                num_embedding, out_dim))
    params["out"] = out
    return params


# ----------------------------------------------------------------------------
# One-time prepare step: compose out-MLP, pack everything into one slab
# ----------------------------------------------------------------------------

def prepare_critic(params, eps=0.0, compute_dtype=jnp.float32):
    """Run ONCE per parameter set (not per forward call)."""
    num_in, emb = params["embed"]["w"].shape
    num_gnns = len(params["gnn"])
    layout, rows, cols = _slab_layout(num_in, emb, num_gnns)

    slab = jnp.zeros((rows, cols), jnp.float32)

    def put(s, name, arr):
        off, r, c = layout[name]
        arr = jnp.asarray(arr, jnp.float32).reshape(r, c)
        return s.at[off:off + r, 0:c].set(arr)

    slab = put(slab, "embed_w", params["embed"]["w"])
    slab = put(slab, "embed_b", params["embed"]["b"].reshape(1, -1))
    for i, p in enumerate(params["gnn"]):
        slab = put(slab, f"w1_{i}", p["lin1"]["w"])
        slab = put(slab, f"b1_{i}", p["lin1"]["b"].reshape(1, -1))
        slab = put(slab, f"w2_{i}", p["lin2"]["w"])
        slab = put(slab, f"b2_{i}", p["lin2"]["b"].reshape(1, -1))

    # Compose the activation-free out Sequential into one affine map (f32):
    #   W = W0 @ W1 @ ... ,   b = ((b0 @ W1 + b1) @ W2 + b2) ...
    w = jnp.asarray(params["out"][0]["w"], jnp.float32)
    b = jnp.asarray(params["out"][0]["b"], jnp.float32).reshape(1, -1)
    for p in params["out"][1:]:
        pw = jnp.asarray(p["w"], jnp.float32)
        pb = jnp.asarray(p["b"], jnp.float32).reshape(1, -1)
        w = w @ pw
        b = b @ pw + pb
    w_pad = jnp.zeros((emb, LANE), jnp.float32).at[:, :w.shape[1]].set(w)
    b_pad = jnp.zeros((1, LANE), jnp.float32).at[:, :b.shape[1]].set(b)
    slab = put(slab, "out_w", w_pad)
    slab = put(slab, "out_b", b_pad)

    meta = CriticMeta(num_in=num_in, emb=emb, num_gnns=num_gnns,
                      eps=float(eps), compute_dtype=compute_dtype)
    return jax.device_put(slab), meta


# ----------------------------------------------------------------------------
# Per-call forward: pad indices, one pallas_call, slice result
# ----------------------------------------------------------------------------

@functools.partial(jax.jit, static_argnames=("meta",))
def _critic_forward_impl(slab, x, adj, center_node_index, *, meta):
    c = center_node_index.shape[0]
    c_pad = max(SUB, _round_up(c, SUB))
    idx = jnp.pad(center_node_index.astype(jnp.int32),
                  (0, c_pad - c)).reshape(c_pad, 1)

    kern = functools.partial(_critic_kernel, meta=meta)
    vmem = pl.BlockSpec(memory_space=pltpu.MemorySpace.VMEM)
    out_pad = pl.pallas_call(
        kern,
        out_shape=jax.ShapeDtypeStruct((c_pad, LANE), jnp.float32),
        in_specs=[vmem, vmem, vmem, vmem],
        out_specs=vmem,
    )(x, adj, idx, slab)
    return out_pad[:c, 0:1]                                   # [C, 1]


def critic_forward(prepared, x, adj, center_node_index):
    """x: [N, F], adj: [N, N] dense 0/1 (no self-loops), center_node_index: [C]."""
    slab, meta = prepared
    return _critic_forward_impl(slab, x, adj, center_node_index, meta=meta)


# ----------------------------------------------------------------------------
# Pure-JAX reference (same math, for correctness check)
# ----------------------------------------------------------------------------

def _reference_forward(params, x, adj, center_node_index, eps=0.0):
    hp = jax.lax.Precision.HIGHEST

    def lin(p, h):
        return jnp.dot(h, p["w"], precision=hp) + p["b"]

    x_in = lin(params["embed"], x)
    h = None
    for i, p in enumerate(params["gnn"]):
        inp = x_in if i == 0 else jnp.concatenate([x_in, h], axis=1)
        agg = jnp.dot(adj, inp, precision=hp) + (1.0 + eps) * inp
        h = lin(p["lin2"], jax.nn.relu(lin(p["lin1"], agg)))
    h = h[center_node_index, :]
    for p in params["out"]:
        h = lin(p, h)
    return h


# ----------------------------------------------------------------------------
# Demo
# ----------------------------------------------------------------------------

if __name__ == "__main__":
    num_nodes = 16
    num_in_features = 8
    num_embedding = 32
    num_GNNs = 2
    num_out_layers = 2

    key = jax.random.PRNGKey(0)
    k_params, k_x, k_adj = jax.random.split(key, 3)

    params = init_critic_params(k_params, num_in_features, num_embedding,
                                num_GNNs, num_out_layers)

    x = jax.random.normal(k_x, (num_nodes, num_in_features), jnp.float32)

    # symmetric 0/1 adjacency, no self-loops (self handled by the (1+eps) term)
    a = (jax.random.uniform(k_adj, (num_nodes, num_nodes)) < 0.25).astype(jnp.float32)
    adj = jnp.clip(a + a.T, 0.0, 1.0) * (1.0 - jnp.eye(num_nodes, dtype=jnp.float32))

    center_node_index = jnp.array([0, 5, 11], dtype=jnp.int32)

    prepared = prepare_critic(params)               # one-time weight prep/pack
    out = critic_forward(prepared, x, adj, center_node_index)
    out = jax.block_until_ready(out)

    ref = _reference_forward(params, x, adj, center_node_index)
    assert out.shape == (center_node_index.shape[0], 1)
    assert out.dtype == jnp.float32
    assert bool(jnp.all(jnp.isfinite(out)))
    max_err = float(jnp.max(jnp.abs(out - ref)))
    assert max_err < 1e-2, f"mismatch vs reference: {max_err}"
    print("KERNEL_OK")
</pallas_src>

<mosaic_0001>
module attributes {stable_mosaic.version = 11 : i64} {
  func.func @_critic_kernel(%arg0: memref<16x8xf32, #tpu.memory_space<vmem>>, %arg1: memref<16x16xf32, #tpu.memory_space<vmem>>, %arg2: memref<8x1xi32, #tpu.memory_space<vmem>>, %arg3: memref<248x128xf32, #tpu.memory_space<vmem>>, %arg4: memref<8x128xf32, #tpu.memory_space<vmem>>) attributes {dimension_semantics = [], scalar_prefetch = 0 : i64, scratch_operands = 0 : i64, tpu.core_type = #tpu.core_type<tc>} {
    %c0 = arith.constant 0 : index
    %c0_0 = arith.constant 0 : index
    %0 = vector.load %arg0[%c0, %c0_0] : memref<16x8xf32, #tpu.memory_space<vmem>>, vector<16x8xf32>
    %1 = tpu.iota {dimensions = array<i32: 0>} : vector<16x16xi32>
    %2 = tpu.iota {dimensions = array<i32: 1>} : vector<16x16xi32>
    %3 = arith.cmpi eq, %1, %2 : vector<16x16xi32>
    %4 = arith.extui %3 : vector<16x16xi1> to vector<16x16xi32>
    %5 = arith.sitofp %4 : vector<16x16xi32> to vector<16x16xf32>
    %c0_1 = arith.constant 0 : index
    %c0_2 = arith.constant 0 : index
    %6 = vector.load %arg1[%c0_1, %c0_2] : memref<16x16xf32, #tpu.memory_space<vmem>>, vector<16x16xf32>
    %cst = arith.constant 1.000000e+00 : f32
    %7 = vector.broadcast %cst : f32 to vector<16x16xf32>
    %8 = arith.mulf %7, %5 : vector<16x16xf32>
    %9 = arith.addf %6, %8 : vector<16x16xf32>
    %c0_3 = arith.constant 0 : index
    %c0_4 = arith.constant 0 : index
    %10 = vector.load %arg3[%c0_3, %c0_4] : memref<248x128xf32, #tpu.memory_space<vmem>>, vector<8x32xf32>
    %cst_5 = arith.constant dense<0.000000e+00> : vector<16x32xf32>
    %11 = tpu.matmul %0, %10, %cst_5 {dimension_numbers = #tpu.dot_dimension_numbers<[1], [0], [0], [1], [0, 0, 1, 1], [], []>} : vector<16x8xf32>, vector<8x32xf32>, vector<16x32xf32> -> vector<16x32xf32>
    %c8 = arith.constant 8 : index
    %c0_6 = arith.constant 0 : index
    %12 = vector.load %arg3[%c8, %c0_6] : memref<248x128xf32, #tpu.memory_space<vmem>>, vector<1x32xf32>
    %13 = vector.broadcast %12 : vector<1x32xf32> to vector<16x32xf32>
    %14 = arith.addf %11, %13 : vector<16x32xf32>
    %cst_7 = arith.constant dense<0.000000e+00> : vector<16x32xf32>
    %15 = tpu.matmul %9, %14, %cst_7 {dimension_numbers = #tpu.dot_dimension_numbers<[1], [0], [0], [1], [0, 0, 1, 1], [], []>} : vector<16x16xf32>, vector<16x32xf32>, vector<16x32xf32> -> vector<16x32xf32>
    %c16 = arith.constant 16 : index
    %c0_8 = arith.constant 0 : index
    %16 = vector.load %arg3[%c16, %c0_8] : memref<248x128xf32, #tpu.memory_space<vmem>>, vector<32x32xf32>
    %cst_9 = arith.constant dense<0.000000e+00> : vector<16x32xf32>
    %17 = tpu.matmul %15, %16, %cst_9 {dimension_numbers = #tpu.dot_dimension_numbers<[1], [0], [0], [1], [0, 0, 1, 1], [], []>} : vector<16x32xf32>, vector<32x32xf32>, vector<16x32xf32> -> vector<16x32xf32>
    %c48 = arith.constant 48 : index
    %c0_10 = arith.constant 0 : index
    %18 = vector.load %arg3[%c48, %c0_10] : memref<248x128xf32, #tpu.memory_space<vmem>>, vector<1x32xf32>
    %19 = vector.broadcast %18 : vector<1x32xf32> to vector<16x32xf32>
    %20 = arith.addf %17, %19 : vector<16x32xf32>
    %cst_11 = arith.constant 0.000000e+00 : f32
    %21 = vector.broadcast %cst_11 : f32 to vector<16x32xf32>
    %22 = arith.maximumf %20, %21 : vector<16x32xf32>
    %c56 = arith.constant 56 : index
    %c0_12 = arith.constant 0 : index
    %23 = vector.load %arg3[%c56, %c0_12] : memref<248x128xf32, #tpu.memory_space<vmem>>, vector<32x32xf32>
    %cst_13 = arith.constant dense<0.000000e+00> : vector<16x32xf32>
    %24 = tpu.matmul %22, %23, %cst_13 {dimension_numbers = #tpu.dot_dimension_numbers<[1], [0], [0], [1], [0, 0, 1, 1], [], []>} : vector<16x32xf32>, vector<32x32xf32>, vector<16x32xf32> -> vector<16x32xf32>
    %c88 = arith.constant 88 : index
    %c0_14 = arith.constant 0 : index
    %25 = vector.load %arg3[%c88, %c0_14] : memref<248x128xf32, #tpu.memory_space<vmem>>, vector<1x32xf32>
    %26 = vector.broadcast %25 : vector<1x32xf32> to vector<16x32xf32>
    %27 = arith.addf %24, %26 : vector<16x32xf32>
    %cst_15 = arith.constant dense<0.000000e+00> : vector<16x32xf32>
    %28 = tpu.matmul %9, %27, %cst_15 {dimension_numbers = #tpu.dot_dimension_numbers<[1], [0], [0], [1], [0, 0, 1, 1], [], []>} : vector<16x16xf32>, vector<16x32xf32>, vector<16x32xf32> -> vector<16x32xf32>
    %29 = tpu.concatenate %15, %28 in 1 : vector<16x32xf32>, vector<16x32xf32> -> vector<16x64xf32>
    %c96 = arith.constant 96 : index
    %c0_16 = arith.constant 0 : index
    %30 = vector.load %arg3[%c96, %c0_16] : memref<248x128xf32, #tpu.memory_space<vmem>>, vector<64x32xf32>
    %cst_17 = arith.constant dense<0.000000e+00> : vector<16x32xf32>
    %31 = tpu.matmul %29, %30, %cst_17 {dimension_numbers = #tpu.dot_dimension_numbers<[1], [0], [0], [1], [0, 0, 1, 1], [], []>} : vector<16x64xf32>, vector<64x32xf32>, vector<16x32xf32> -> vector<16x32xf32>
    %c160 = arith.constant 160 : index
    %c0_18 = arith.constant 0 : index
    %32 = vector.load %arg3[%c160, %c0_18] : memref<248x128xf32, #tpu.memory_space<vmem>>, vector<1x32xf32>
    %33 = vector.broadcast %32 : vector<1x32xf32> to vector<16x32xf32>
    %34 = arith.addf %31, %33 : vector<16x32xf32>
    %cst_19 = arith.constant 0.000000e+00 : f32
    %35 = vector.broadcast %cst_19 : f32 to vector<16x32xf32>
    %36 = arith.maximumf %34, %35 : vector<16x32xf32>
    %c168 = arith.constant 168 : index
    %c0_20 = arith.constant 0 : index
    %37 = vector.load %arg3[%c168, %c0_20] : memref<248x128xf32, #tpu.memory_space<vmem>>, vector<32x32xf32>
    %cst_21 = arith.constant dense<0.000000e+00> : vector<16x32xf32>
    %38 = tpu.matmul %36, %37, %cst_21 {dimension_numbers = #tpu.dot_dimension_numbers<[1], [0], [0], [1], [0, 0, 1, 1], [], []>} : vector<16x32xf32>, vector<32x32xf32>, vector<16x32xf32> -> vector<16x32xf32>
    %c200 = arith.constant 200 : index
    %c0_22 = arith.constant 0 : index
    %39 = vector.load %arg3[%c200, %c0_22] : memref<248x128xf32, #tpu.memory_space<vmem>>, vector<1x32xf32>
    %40 = vector.broadcast %39 : vector<1x32xf32> to vector<16x32xf32>
    %41 = arith.addf %38, %40 : vector<16x32xf32>
    %42 = tpu.iota {dimensions = array<i32: 1>} : vector<8x16xi32>
    %c0_23 = arith.constant 0 : index
    %c0_24 = arith.constant 0 : index
    %43 = vector.load %arg2[%c0_23, %c0_24] : memref<8x1xi32, #tpu.memory_space<vmem>>, vector<8x1xi32>
    %44 = vector.broadcast %43 : vector<8x1xi32> to vector<8x16xi32>
    %45 = arith.cmpi eq, %42, %44 : vector<8x16xi32>
    %46 = arith.extui %45 : vector<8x16xi1> to vector<8x16xi32>
    %47 = arith.sitofp %46 : vector<8x16xi32> to vector<8x16xf32>
    %cst_25 = arith.constant dense<0.000000e+00> : vector<8x32xf32>
    %48 = tpu.matmul %47, %41, %cst_25 {dimension_numbers = #tpu.dot_dimension_numbers<[1], [0], [0], [1], [0, 0, 1, 1], [], []>} : vector<8x16xf32>, vector<16x32xf32>, vector<8x32xf32> -> vector<8x32xf32>
    %c208 = arith.constant 208 : index
    %c0_26 = arith.constant 0 : index
    %49 = vector.load %arg3[%c208, %c0_26] : memref<248x128xf32, #tpu.memory_space<vmem>>, vector<32x128xf32>
    %cst_27 = arith.constant dense<0.000000e+00> : vector<8x128xf32>
    %50 = tpu.matmul %48, %49, %cst_27 {dimension_numbers = #tpu.dot_dimension_numbers<[1], [0], [0], [1], [0, 0, 1, 1], [], []>} : vector<8x32xf32>, vector<32x128xf32>, vector<8x128xf32> -> vector<8x128xf32>
    %c240 = arith.constant 240 : index
    %c0_28 = arith.constant 0 : index
    %51 = vector.load %arg3[%c240, %c0_28] : memref<248x128xf32, #tpu.memory_space<vmem>>, vector<1x128xf32>
    %52 = vector.broadcast %51 : vector<1x128xf32> to vector<8x128xf32>
    %53 = arith.addf %50, %52 : vector<8x128xf32>
    %c0_29 = arith.constant 0 : index
    %c0_30 = arith.constant 0 : index
    %54 = vector.load %arg4[%c0_29, %c0_30] : memref<8x128xf32, #tpu.memory_space<vmem>>, vector<8x128xf32>
    tpu.vector_store %arg4[%c0_29, %c0_30], %53 {strides = array<i32>} : memref<8x128xf32, #tpu.memory_space<vmem>>, vector<8x128xf32>,
    return
  }
}

</mosaic_0001>

<llo_original>
// kernel: _critic_forward_impl.1
$region0: #{_critic_forward_impl.1}
  #allocation0 [shape = 'u32[]', space=smem, size = 0x4, offset = 0x4, fixed_abs, tag = 'smem constant byte address 0x4 - core index']
  #allocation1 [shape = 'u32[144,128]{1,0:T(1,128)}', space=vmem, size = 0x12000, scoped, tag = 'internal scratch']
  %s0 = inlined_call_operand.vmem [shape: f32[16,8], index: 0, kind: input, shape index: {}]
  %s1 = inlined_call_operand.vmem [shape: f32[16,16], index: 1, kind: input, shape index: {}]
  %s2 = inlined_call_operand.vmem [shape: s32[8,1], index: 2, kind: input, shape index: {}]
  %s3 = inlined_call_operand.hbm [shape: f32[248,128], index: 3, kind: input, shape index: {}]
  %s4 = inlined_call_operand.vmem [shape: f32[8,128], index: 4, kind: output, shape index: {}]
  %s5 = sld [smem:[#allocation0]]
  $region30: #{_critic_forward_impl.1} parent=0
    _
  %s7 = ssub.s32 1, %s5
  %s8 = scalar_select 0, %s7, %s5
  $region1: #{_critic_forward_impl.1} parent=0
    #allocation2 [shape = 'u8[126976]{0}', space=vmem, size = 0x1f000, scoped, tag = 'input window, operand 3, single buffered']
    #allocation3 [shape = 's32[1]{0}', space=sflag, size = 0x4, scoped, tag = 'scoped memory for _critic_forward_impl.1']
    %9 = vsyncpa [#allocation3], 0
    // Predicated region
    $region2: #{_critic_forward_impl.1} parent=1 // pred_check
      _
    $region3: #{_critic_forward_impl.1} parent=1 // pred_check_branch
      %11 = sbr.rel (0) target = $region5
    $region4: #{_critic_forward_impl.1} parent=1 // pred_region
      _
    $region5: #{_critic_forward_impl.1} parent=1 // pred_fallthru
      _
    // Predicated region
    $region6: #{_critic_forward_impl.1} parent=1 // pred_check
      _
    $region7: #{_critic_forward_impl.1} parent=1 // pred_check_branch
      %13 = sbr.rel (0) target = $region9
    $region8: #{_critic_forward_impl.1} parent=1 // pred_region
      _
    $region9: #{_critic_forward_impl.1} parent=1 // pred_fallthru
      _
    // Predicated region
    $region10: #{_critic_forward_impl.1} parent=1 // pred_check
      _
    $region11: #{_critic_forward_impl.1} parent=1 // pred_check_branch
      %15 = sbr.rel (0) target = $region13
    $region12: #{_critic_forward_impl.1} parent=1 // pred_region
      _
    $region13: #{_critic_forward_impl.1} parent=1 // pred_fallthru
      _
    // Predicated region
    $region14: #{_critic_forward_impl.1} parent=1 // pred_check
      _
    $region15: #{_critic_forward_impl.1} parent=1 // pred_check_branch
      %17 = sbr.rel (0) target = $region17
    $region16: #{_critic_forward_impl.1} parent=1 // pred_region
      %s19 = ssub.s32 3968, 3968
      %20 = vsyncadd [#allocation3], %s19
      %s21 = sshll.u32 [#allocation2], 4
      %s22 = int_to_ptr.vmem [resolvable:$true] %s21
      %27 = dma.hbm_to_vmem [thread:$0]  %s3, 3968, %s22, [#allocation3], 128, 128, 8
    $region17: #{_critic_forward_impl.1} parent=1 // pred_fallthru
      _
    // Predicated region
    $region18: #{_critic_forward_impl.1} parent=1 // pred_check
      _
    $region19: #{_critic_forward_impl.1} parent=1 // pred_check_branch
      %29 = sbr.rel (0) target = $region21
    $region20: #{_critic_forward_impl.1} parent=1 // pred_region
      %30 = dma.done [#allocation3], 3968
    $region21: #{_critic_forward_impl.1} parent=1 // pred_fallthru
      _
    %v31 = vld [vmem:[%s0] sm:$0xff]
    %v32 = vld [vmem:[%s0 + $0x8] sm:$0xff]
    %v33 = vlaneseq
    %v34 = vshrl.u32 %v33, 7
    %v35 = vadd.s32 %v34, 8
    %v36 = vlaneseq
    %v37 = vand.u32 %v36, 127
    %vm38 = vcmp.eq.s32.totalorder %v34, %v37
    %vm39 = vcmp.eq.s32.totalorder %v35, %v37
    %v40 = vsel %vm38, 1, 0
    %v41 = vsel %vm39, 1, 0
    %v42 = vcvt.s32.f32 %v40
    %v43 = vcvt.s32.f32 %v41
    %v44 = vld [vmem:[%s1] sm:$0xff]
    %v45 = vld [vmem:[%s1 + $0x8] sm:$0xff]
    %v46 = vadd.f32 %v44, %v42
    %v47 = vadd.f32 %v45, %v43
    %v48 = vld [vmem:[#allocation2] sm:$0xff]
    %v49 = vld [vmem:[#allocation2 + $0x8] sm:$0x1]
    %v50 = vlaneseq
    %v51 = vshrl.u32 %v50, 7
    %v52 = vsub.s32 0, %v51
    %v53 = vrot.slane %v49, %v52
    %vm54 = vcmask 64512
    %v56 = vsel %vm54, %v31, 0
    %v59 = vsel %vm54, %v32, 0
    %61 = vmatprep.subr.mxu0 0.0
    %62 = vmatpush1.msra.mxu0 %v48
    %63 = vmatprep.subr.mxu0 0.0
    %64 = vmatpush1.msra.mxu0 0.0
    %65 = vmatprep.subr.mxu0 0.0
    %66 = vmatpush1.msra.mxu0 0.0
    %67 = vmatprep.subr.mxu0 0.0
    %68 = vmatpush1.msra.mxu0 0.0
    %69 = vmatprep.subr.mxu0 0.0
    %70 = vmatpush1.msra.mxu0 0.0
    %71 = vmatprep.subr.mxu0 0.0
    %72 = vmatpush1.msra.mxu0 0.0
    %73 = vmatprep.subr.mxu0 0.0
    %74 = vmatpush1.msra.mxu0 0.0
    %75 = vmatprep.subr.mxu0 0.0
    %76 = vmatpush1.msra.mxu0 0.0
    %77 = vmatprep.subr.mxu0 0.0
    %78 = vmatpush1.msra.mxu0 0.0
    %79 = vmatprep.subr.mxu0 0.0
    %80 = vmatpush1.msra.mxu0 0.0
    %81 = vmatprep.subr.mxu0 0.0
    %82 = vmatpush1.msra.mxu0 0.0
    %83 = vmatprep.subr.mxu0 0.0
    %84 = vmatpush1.msra.mxu0 0.0
    %85 = vmatprep.subr.mxu0 0.0
    %86 = vmatpush1.msra.mxu0 0.0
    %87 = vmatprep.subr.mxu0 0.0
    %88 = vmatpush1.msra.mxu0 0.0
    %89 = vmatprep.subr.mxu0 0.0
    %90 = vmatpush1.msra.mxu0 0.0
    %91 = vmatprep.subr.mxu0 0.0
    %92 = vmatpush1.msra.mxu0 0.0
    %93 = vmatprep.subr.mxu0 0.0
    %94 = vmatpush1.msra.mxu0 0.0
    %95 = vmatprep.subr.mxu0 0.0
    %96 = vmatpush1.msra.mxu0 0.0
    %97 = vmatprep.subr.mxu0 0.0
    %98 = vmatpush1.msra.mxu0 0.0
    %99 = vmatprep.subr.mxu0 0.0
    %100 = vmatpush1.msra.mxu0 0.0
    %101 = vmatprep.subr.mxu0 0.0
    %102 = vmatpush1.msra.mxu0 0.0
    %103 = vmatprep.subr.mxu0 0.0
    %104 = vmatpush1.msra.mxu0 0.0
    %105 = vmatprep.subr.mxu0 0.0
    %106 = vmatpush1.msra.mxu0 0.0
    %107 = vmatprep.subr.mxu0 0.0
    %108 = vmatpush1.msra.mxu0 0.0
    %109 = vmatprep.subr.mxu0 0.0
    %110 = vmatpush1.msra.mxu0 0.0
    %111 = vmatprep.subr.mxu0 0.0
    %112 = vmatpush1.msra.mxu0 0.0
    %113 = vmatprep.subr.mxu0 0.0
    %114 = vmatpush1.msra.mxu0 0.0
    %115 = vmatprep.subr.mxu0 0.0
    %116 = vmatpush1.msra.mxu0 0.0
    %117 = vmatprep.subr.mxu0 0.0
    %118 = vmatpush1.msra.mxu0 0.0
    %119 = vmatprep.subr.mxu0 0.0
    %120 = vmatpush1.msra.mxu0 0.0
    %121 = vmatprep.subr.mxu0 0.0
    %122 = vmatpush1.msra.mxu0 0.0
    %123 = vmatprep.subr.mxu0 0.0
    %124 = vmatpush1.msra.mxu0 0.0
    %125 = vmatprep.mubr.f32.mxu0 0.0
    %126 = vmatmul.mubr.f32.gmra.mrb[0].mxu0 %v56
    %v127 = vpop.f32.mrb[0].mxu0
    %v128 = vadd.f32 %v53, %v127
    %v129 = vpop.f32.mrb[0].mxu0
    %130 = vmatprep.mubr.f32.mxu0 0.0
    %131 = vmatmul.mubr.f32.gmra.mrb[0].mxu0 %v59
    %v132 = vpop.f32.mrb[0].mxu0
    %v133 = vadd.f32 %v53, %v132
    %v134 = vpop.f32.mrb[0].mxu0
    %135 = vdwg.mxu0
    %vm136 = vcmask 130048
    %v138 = vsel %vm136, %v46, 0
    %v141 = vsel %vm136, %v47, 0
    %143 = vmatprep.subr.mxu0 0.0
    %144 = vmatpush1.msra.mxu0 %v128
    %145 = vmatprep.subr.mxu0 0.0
    %146 = vmatpush1.msra.mxu0 %v133
    %147 = vmatprep.subr.mxu0 0.0
    %148 = vmatpush1.msra.mxu0 0.0
    %149 = vmatprep.subr.mxu0 0.0
    %150 = vmatpush1.msra.mxu0 0.0
    %151 = vmatprep.subr.mxu0 0.0
    %152 = vmatpush1.msra.mxu0 0.0
    %153 = vmatprep.subr.mxu0 0.0
    %154 = vmatpush1.msra.mxu0 0.0
    %155 = vmatprep.subr.mxu0 0.0
    %156 = vmatpush1.msra.mxu0 0.0
    %157 = vmatprep.subr.mxu0 0.0
    %158 = vmatpush1.msra.mxu0 0.0
    %159 = vmatprep.subr.mxu0 0.0
    %160 = vmatpush1.msra.mxu0 0.0
    %161 = vmatprep.subr.mxu0 0.0
    %162 = vmatpush1.msra.mxu0 0.0
    %163 = vmatprep.subr.mxu0 0.0
    %164 = vmatpush1.msra.mxu0 0.0
    %165 = vmatprep.subr.mxu0 0.0
    %166 = vmatpush1.msra.mxu0 0.0
    %167 = vmatprep.subr.mxu0 0.0
    %168 = vmatpush1.msra.mxu0 0.0
    %169 = vmatprep.subr.mxu0 0.0
    %170 = vmatpush1.msra.mxu0 0.0
    %171 = vmatprep.subr.mxu0 0.0
    %172 = vmatpush1.msra.mxu0 0.0
    %173 = vmatprep.subr.mxu0 0.0
    %174 = vmatpush1.msra.mxu0 0.0
    %175 = vmatprep.subr.mxu0 0.0
    %176 = vmatpush1.msra.mxu0 0.0
    %177 = vmatprep.subr.mxu0 0.0
    %178 = vmatpush1.msra.mxu0 0.0
    %179 = vmatprep.subr.mxu0 0.0
    %180 = vmatpush1.msra.mxu0 0.0
    %181 = vmatprep.subr.mxu0 0.0
    %182 = vmatpush1.msra.mxu0 0.0
    %183 = vmatprep.subr.mxu0 0.0
    %184 = vmatpush1.msra.mxu0 0.0
    %185 = vmatprep.subr.mxu0 0.0
    %186 = vmatpush1.msra.mxu0 0.0
    %187 = vmatprep.subr.mxu0 0.0
    %188 = vmatpush1.msra.mxu0 0.0
    %189 = vmatprep.subr.mxu0 0.0
    %190 = vmatpush1.msra.mxu0 0.0
    %191 = vmatprep.subr.mxu0 0.0
    %192 = vmatpush1.msra.mxu0 0.0
    %193 = vmatprep.subr.mxu0 0.0
    %194 = vmatpush1.msra.mxu0 0.0
    %195 = vmatprep.subr.mxu0 0.0
    %196 = vmatpush1.msra.mxu0 0.0
    %197 = vmatprep.subr.mxu0 0.0
    %198 = vmatpush1.msra.mxu0 0.0
    %199 = vmatprep.subr.mxu0 0.0
    %200 = vmatpush1.msra.mxu0 0.0
    %201 = vmatprep.subr.mxu0 0.0
    %202 = vmatpush1.msra.mxu0 0.0
    %203 = vmatprep.subr.mxu0 0.0
    %204 = vmatpush1.msra.mxu0 0.0
    %205 = vmatprep.subr.mxu0 0.0
    %206 = vmatpush1.msra.mxu0 0.0
    %207 = vmatprep.mubr.f32.mxu0 0.0
    %208 = vmatmul.mubr.f32.gmra.mrb[0].mxu0 %v138
    %v209 = vpop.f32.mrb[0].mxu0
    %v210 = vadd.f32 0.0, %v209
    %v211 = vpop.f32.mrb[0].mxu0
    %212 = vmatprep.mubr.f32.mxu0 0.0
    %213 = vmatmul.mubr.f32.gmra.mrb[0].mxu0 %v141
    %v214 = vpop.f32.mrb[0].mxu0
    %v215 = vadd.f32 0.0, %v214
    %v216 = vpop.f32.mrb[0].mxu0
    %217 = vdwg.mxu0
    %v218 = vld [vmem:[#allocation2 + $0x10] sm:$0xff]
    %v219 = vld [vmem:[#allocation2 + $0x18] sm:$0xff]
    %v220 = vld [vmem:[#allocation2 + $0x20] sm:$0xff]
    %v221 = vld [vmem:[#allocation2 + $0x28] sm:$0xff]
    %v222 = vld [vmem:[#allocation2 + $0x30] sm:$0x1]
    %v223 = vlaneseq
    %v224 = vshrl.u32 %v223, 7
    %v225 = vsub.s32 0, %v224
    %v226 = vrot.slane %v222, %v225
    %vm227 = vcmask 261120
    %v229 = vsel %vm227, %v210, 0
    %v232 = vsel %vm227, %v215, 0
    %234 = vmatprep.subr.mxu0 0.0
    %235 = vmatpush1.msra.mxu0 %v218
    %236 = vmatprep.subr.mxu0 0.0
    %237 = vmatpush1.msra.mxu0 %v219
    %238 = vmatprep.subr.mxu0 0.0
    %239 = vmatpush1.msra.mxu0 %v220
    %240 = vmatprep.subr.mxu0 0.0
    %241 = vmatpush1.msra.mxu0 %v221
    %242 = vmatprep.subr.mxu0 0.0
    %243 = vmatpush1.msra.mxu0 0.0
    %244 = vmatprep.subr.mxu0 0.0
    %245 = vmatpush1.msra.mxu0 0.0
    %246 = vmatprep.subr.mxu0 0.0
    %247 = vmatpush1.msra.mxu0 0.0
    %248 = vmatprep.subr.mxu0 0.0
    %249 = vmatpush1.msra.mxu0 0.0
    %250 = vmatprep.subr.mxu0 0.0
    %251 = vmatpush1.msra.mxu0 0.0
    %252 = vmatprep.subr.mxu0 0.0
    %253 = vmatpush1.msra.mxu0 0.0
    %254 = vmatprep.subr.mxu0 0.0
    %255 = vmatpush1.msra.mxu0 0.0
    %256 = vmatprep.subr.mxu0 0.0
    %257 = vmatpush1.msra.mxu0 0.0
    %258 = vmatprep.subr.mxu0 0.0
    %259 = vmatpush1.msra.mxu0 0.0
    %260 = vmatprep.subr.mxu0 0.0
    %261 = vmatpush1.msra.mxu0 0.0
    %262 = vmatprep.subr.mxu0 0.0
    %263 = vmatpush1.msra.mxu0 0.0
    %264 = vmatprep.subr.mxu0 0.0
    %265 = vmatpush1.msra.mxu0 0.0
    %266 = vmatprep.subr.mxu0 0.0
    %267 = vmatpush1.msra.mxu0 0.0
    %268 = vmatprep.subr.mxu0 0.0
    %269 = vmatpush1.msra.mxu0 0.0
    %270 = vmatprep.subr.mxu0 0.0
    %271 = vmatpush1.msra.mxu0 0.0
    %272 = vmatprep.subr.mxu0 0.0
    %273 = vmatpush1.msra.mxu0 0.0
    %274 = vmatprep.subr.mxu0 0.0
    %275 = vmatpush1.msra.mxu0 0.0
    %276 = vmatprep.subr.mxu0 0.0
    %277 = vmatpush1.msra.mxu0 0.0
    %278 = vmatprep.subr.mxu0 0.0
    %279 = vmatpush1.msra.mxu0 0.0
    %280 = vmatprep.subr.mxu0 0.0
    %281 = vmatpush1.msra.mxu0 0.0
    %282 = vmatprep.subr.mxu0 0.0
    %283 = vmatpush1.msra.mxu0 0.0
    %284 = vmatprep.subr.mxu0 0.0
    %285 = vmatpush1.msra.mxu0 0.0
    %286 = vmatprep.subr.mxu0 0.0
    %287 = vmatpush1.msra.mxu0 0.0
    %288 = vmatprep.subr.mxu0 0.0
    %289 = vmatpush1.msra.mxu0 0.0
    %290 = vmatprep.subr.mxu0 0.0
    %291 = vmatpush1.msra.mxu0 0.0
    %292 = vmatprep.subr.mxu0 0.0
    %293 = vmatpush1.msra.mxu0 0.0
    %294 = vmatprep.subr.mxu0 0.0
    %295 = vmatpush1.msra.mxu0 0.0
    %296 = vmatprep.subr.mxu0 0.0
    %297 = vmatpush1.msra.mxu0 0.0
    %298 = vmatprep.mubr.f32.mxu0 0.0
    %299 = vmatmul.mubr.f32.gmra.mrb[0].mxu0 %v229
    %v300 = vpop.f32.mrb[0].mxu0
    %v301 = vadd.f32 %v226, %v300
    %v302 = vpop.f32.mrb[0].mxu0
    %303 = vmatprep.mubr.f32.mxu0 0.0
    %304 = vmatmul.mubr.f32.gmra.mrb[0].mxu0 %v232
    %v305 = vpop.f32.mrb[0].mxu0
    %v306 = vadd.f32 %v226, %v305
    %v307 = vpop.f32.mrb[0].mxu0
    %308 = vdwg.mxu0
    %v309 = vmax.f32 %v301, 0.0
    %v310 = vmax.f32 %v306, 0.0
    %v311 = vld [vmem:[#allocation2 + $0x38] sm:$0xff]
    %v312 = vld [vmem:[#allocation2 + $0x40] sm:$0xff]
    %v313 = vld [vmem:[#allocation2 + $0x48] sm:$0xff]
    %v314 = vld [vmem:[#allocation2 + $0x50] sm:$0xff]
    %v315 = vld [vmem:[#allocation2 + $0x58] sm:$0x1]
    %v316 = vlaneseq
    %v317 = vshrl.u32 %v316, 7
    %v318 = vsub.s32 0, %v317
    %v319 = vrot.slane %v315, %v318
    %v321 = vsel %vm227, %v309, 0
    %v324 = vsel %vm227, %v310, 0
    %326 = vmatprep.subr.mxu0 0.0
    %327 = vmatpush1.msra.mxu0 %v311
    %328 = vmatprep.subr.mxu0 0.0
    %329 = vmatpush1.msra.mxu0 %v312
    %330 = vmatprep.subr.mxu0 0.0
    %331 = vmatpush1.msra.mxu0 %v313
    %332 = vmatprep.subr.mxu0 0.0
    %333 = vmatpush1.msra.mxu0 %v314
    %334 = vmatprep.subr.mxu0 0.0
    %335 = vmatpush1.msra.mxu0 0.0
    %336 = vmatprep.subr.mxu0 0.0
    %337 = vmatpush1.msra.mxu0 0.0
    %338 = vmatprep.subr.mxu0 0.0
    %339 = vmatpush1.msra.mxu0 0.0
    %340 = vmatprep.subr.mxu0 0.0
    %341 = vmatpush1.msra.mxu0 0.0
    %342 = vmatprep.subr.mxu0 0.0
    %343 = vmatpush1.msra.mxu0 0.0
    %344 = vmatprep.subr.mxu0 0.0
    %345 = vmatpush1.msra.mxu0 0.0
    %346 = vmatprep.subr.mxu0 0.0
    %347 = vmatpush1.msra.mxu0 0.0
    %348 = vmatprep.subr.mxu0 0.0
    %349 = vmatpush1.msra.mxu0 0.0
    %350 = vmatprep.subr.mxu0 0.0
    %351 = vmatpush1.msra.mxu0 0.0
    %352 = vmatprep.subr.mxu0 0.0
    %353 = vmatpush1.msra.mxu0 0.0
    %354 = vmatprep.subr.mxu0 0.0
    %355 = vmatpush1.msra.mxu0 0.0
    %356 = vmatprep.subr.mxu0 0.0
    %357 = vmatpush1.msra.mxu0 0.0
    %358 = vmatprep.subr.mxu0 0.0
    %359 = vmatpush1.msra.mxu0 0.0
    %360 = vmatprep.subr.mxu0 0.0
    %361 = vmatpush1.msra.mxu0 0.0
    %362 = vmatprep.subr.mxu0 0.0
    %363 = vmatpush1.msra.mxu0 0.0
    %364 = vmatprep.subr.mxu0 0.0
    %365 = vmatpush1.msra.mxu0 0.0
    %366 = vmatprep.subr.mxu0 0.0
    %367 = vmatpush1.msra.mxu0 0.0
    %368 = vmatprep.subr.mxu0 0.0
    %369 = vmatpush1.msra.mxu0 0.0
    %370 = vmatprep.subr.mxu0 0.0
    %371 = vmatpush1.msra.mxu0 0.0
    %372 = vmatprep.subr.mxu0 0.0
    %373 = vmatpush1.msra.mxu0 0.0
    %374 = vmatprep.subr.mxu0 0.0
    %375 = vmatpush1.msra.mxu0 0.0
    %376 = vmatprep.subr.mxu0 0.0
    %377 = vmatpush1.msra.mxu0 0.0
    %378 = vmatprep.subr.mxu0 0.0
    %379 = vmatpush1.msra.mxu0 0.0
    %380 = vmatprep.subr.mxu0 0.0
    %381 = vmatpush1.msra.mxu0 0.0
    %382 = vmatprep.subr.mxu0 0.0
    %383 = vmatpush1.msra.mxu0 0.0
    %384 = vmatprep.subr.mxu0 0.0
    %385 = vmatpush1.msra.mxu0 0.0
    %386 = vmatprep.subr.mxu0 0.0
    %387 = vmatpush1.msra.mxu0 0.0
    %388 = vmatprep.subr.mxu0 0.0
    %389 = vmatpush1.msra.mxu0 0.0
    %390 = vmatprep.mubr.f32.mxu0 0.0
    %391 = vmatmul.mubr.f32.gmra.mrb[0].mxu0 %v321
    %v392 = vpop.f32.mrb[0].mxu0
    %v393 = vadd.f32 %v319, %v392
    %v394 = vpop.f32.mrb[0].mxu0
    %395 = vmatprep.mubr.f32.mxu0 0.0
    %396 = vmatmul.mubr.f32.gmra.mrb[0].mxu0 %v324
    %v397 = vpop.f32.mrb[0].mxu0
    %v398 = vadd.f32 %v319, %v397
    %v399 = vpop.f32.mrb[0].mxu0
    %400 = vdwg.mxu0
    %401 = vmatprep.subr.mxu0 0.0
    %402 = vmatpush1.msra.mxu0 %v393
    %403 = vmatprep.subr.mxu0 0.0
    %404 = vmatpush1.msra.mxu0 %v398
    %405 = vmatprep.subr.mxu0 0.0
    %406 = vmatpush1.msra.mxu0 0.0
    %407 = vmatprep.subr.mxu0 0.0
    %408 = vmatpush1.msra.mxu0 0.0
    %409 = vmatprep.subr.mxu0 0.0
    %410 = vmatpush1.msra.mxu0 0.0
    %411 = vmatprep.subr.mxu0 0.0
    %412 = vmatpush1.msra.mxu0 0.0
    %413 = vmatprep.subr.mxu0 0.0
    %414 = vmatpush1.msra.mxu0 0.0
    %415 = vmatprep.subr.mxu0 0.0
    %416 = vmatpush1.msra.mxu0 0.0
    %417 = vmatprep.subr.mxu0 0.0
    %418 = vmatpush1.msra.mxu0 0.0
    %419 = vmatprep.subr.mxu0 0.0
    %420 = vmatpush1.msra.mxu0 0.0
    %421 = vmatprep.subr.mxu0 0.0
    %422 = vmatpush1.msra.mxu0 0.0
    %423 = vmatprep.subr.mxu0 0.0
    %424 = vmatpush1.msra.mxu0 0.0
    %425 = vmatprep.subr.mxu0 0.0
    %426 = vmatpush1.msra.mxu0 0.0
    %427 = vmatprep.subr.mxu0 0.0
    %428 = vmatpush1.msra.mxu0 0.0
    %429 = vmatprep.subr.mxu0 0.0
    %430 = vmatpush1.msra.mxu0 0.0
    %431 = vmatprep.subr.mxu0 0.0
    %432 = vmatpush1.msra.mxu0 0.0
    %433 = vmatprep.subr.mxu0 0.0
    %434 = vmatpush1.msra.mxu0 0.0
    %435 = vmatprep.subr.mxu0 0.0
    %436 = vmatpush1.msra.mxu0 0.0
    %437 = vmatprep.subr.mxu0 0.0
    %438 = vmatpush1.msra.mxu0 0.0
    %439 = vmatprep.subr.mxu0 0.0
    %440 = vmatpush1.msra.mxu0 0.0
    %441 = vmatprep.subr.mxu0 0.0
    %442 = vmatpush1.msra.mxu0 0.0
    %443 = vmatprep.subr.mxu0 0.0
    %444 = vmatpush1.msra.mxu0 0.0
    %445 = vmatprep.subr.mxu0 0.0
    %446 = vmatpush1.msra.mxu0 0.0
    %447 = vmatprep.subr.mxu0 0.0
    %448 = vmatpush1.msra.mxu0 0.0
    %449 = vmatprep.subr.mxu0 0.0
    %450 = vmatpush1.msra.mxu0 0.0
    %451 = vmatprep.subr.mxu0 0.0
    %452 = vmatpush1.msra.mxu0 0.0
    %453 = vmatprep.subr.mxu0 0.0
    %454 = vmatpush1.msra.mxu0 0.0
    %455 = vmatprep.subr.mxu0 0.0
    %456 = vmatpush1.msra.mxu0 0.0
    %457 = vmatprep.subr.mxu0 0.0
    %458 = vmatpush1.msra.mxu0 0.0
    %459 = vmatprep.subr.mxu0 0.0
    %460 = vmatpush1.msra.mxu0 0.0
    %461 = vmatprep.subr.mxu0 0.0
    %462 = vmatpush1.msra.mxu0 0.0
    %463 = vmatprep.subr.mxu0 0.0
    %464 = vmatpush1.msra.mxu0 0.0
    %465 = vmatprep.mubr.f32.mxu0 0.0
    %466 = vmatmul.mubr.f32.gmra.mrb[0].mxu0 %v138
    %v467 = vpop.f32.mrb[0].mxu0
    %v468 = vadd.f32 0.0, %v467
    %v469 = vpop.f32.mrb[0].mxu0
    %470 = vmatprep.mubr.f32.mxu0 0.0
    %471 = vmatmul.mubr.f32.gmra.mrb[0].mxu0 %v141
    %v472 = vpop.f32.mrb[0].mxu0
    %v473 = vadd.f32 0.0, %v472
    %v474 = vpop.f32.mrb[0].mxu0
    %475 = vdwg.mxu0
    %478 = vrot.lane.b32.xlu0 %v468, 32
    %v479 = vpop.permute.xlu0 %478
    %480 = vrot.lane.b32.xlu0 %v473, 32
    %v481 = vpop.permute.xlu0 %480
    %v484 = vsel %vm227, %v210, %v479
    %v485 = vsel %vm227, %v215, %v481
    %v486 = vld [vmem:[#allocation2 + $0x60] sm:$0xff]
    %v487 = vld [vmem:[#allocation2 + $0x68] sm:$0xff]
    %v488 = vld [vmem:[#allocation2 + $0x70] sm:$0xff]
    %v489 = vld [vmem:[#allocation2 + $0x78] sm:$0xff]
    %v490 = vld [vmem:[#allocation2 + $0x80] sm:$0xff]
    %v491 = vld [vmem:[#allocation2 + $0x88] sm:$0xff]
    %v492 = vld [vmem:[#allocation2 + $0x90] sm:$0xff]
    %v493 = vld [vmem:[#allocation2 + $0x98] sm:$0xff]
    %v494 = vld [vmem:[#allocation2 + $0xa0] sm:$0x1]
    %v495 = vlaneseq
    %v496 = vshrl.u32 %v495, 7
    %v497 = vsub.s32 0, %v496
    %v498 = vrot.slane %v494, %v497
    %vm499 = vcmask 523264
    %v501 = vsel %vm499, %v484, 0
    %v504 = vsel %vm499, %v485, 0
    %506 = vmatprep.subr.mxu0 0.0
    %507 = vmatpush1.msra.mxu0 %v486
    %508 = vmatprep.subr.mxu0 0.0
    %509 = vmatpush1.msra.mxu0 %v487
    %510 = vmatprep.subr.mxu0 0.0
    %511 = vmatpush1.msra.mxu0 %v488
    %512 = vmatprep.subr.mxu0 0.0
    %513 = vmatpush1.msra.mxu0 %v489
    %514 = vmatprep.subr.mxu0 0.0
    %515 = vmatpush1.msra.mxu0 %v490
    %516 = vmatprep.subr.mxu0 0.0
    %517 = vmatpush1.msra.mxu0 %v491
    %518 = vmatprep.subr.mxu0 0.0
    %519 = vmatpush1.msra.mxu0 %v492
    %520 = vmatprep.subr.mxu0 0.0
    %521 = vmatpush1.msra.mxu0 %v493
    %522 = vmatprep.subr.mxu0 0.0
    %523 = vmatpush1.msra.mxu0 0.0
    %524 = vmatprep.subr.mxu0 0.0
    %525 = vmatpush1.msra.mxu0 0.0
    %526 = vmatprep.subr.mxu0 0.0
    %527 = vmatpush1.msra.mxu0 0.0
    %528 = vmatprep.subr.mxu0 0.0
    %529 = vmatpush1.msra.mxu0 0.0
    %530 = vmatprep.subr.mxu0 0.0
    %531 = vmatpush1.msra.mxu0 0.0
    %532 = vmatprep.subr.mxu0 0.0
    %533 = vmatpush1.msra.mxu0 0.0
    %534 = vmatprep.subr.mxu0 0.0
    %535 = vmatpush1.msra.mxu0 0.0
    %536 = vmatprep.subr.mxu0 0.0
    %537 = vmatpush1.msra.mxu0 0.0
    %538 = vmatprep.subr.mxu0 0.0
    %539 = vmatpush1.msra.mxu0 0.0
    %540 = vmatprep.subr.mxu0 0.0
    %541 = vmatpush1.msra.mxu0 0.0
    %542 = vmatprep.subr.mxu0 0.0
    %543 = vmatpush1.msra.mxu0 0.0
    %544 = vmatprep.subr.mxu0 0.0
    %545 = vmatpush1.msra.mxu0 0.0
    %546 = vmatprep.subr.mxu0 0.0
    %547 = vmatpush1.msra.mxu0 0.0
    %548 = vmatprep.subr.mxu0 0.0
    %549 = vmatpush1.msra.mxu0 0.0
    %550 = vmatprep.subr.mxu0 0.0
    %551 = vmatpush1.msra.mxu0 0.0
    %552 = vmatprep.subr.mxu0 0.0
    %553 = vmatpush1.msra.mxu0 0.0
    %554 = vmatprep.subr.mxu0 0.0
    %555 = vmatpush1.msra.mxu0 0.0
    %556 = vmatprep.subr.mxu0 0.0
    %557 = vmatpush1.msra.mxu0 0.0
    %558 = vmatprep.subr.mxu0 0.0
    %559 = vmatpush1.msra.mxu0 0.0
    %560 = vmatprep.subr.mxu0 0.0
    %561 = vmatpush1.msra.mxu0 0.0
    %562 = vmatprep.subr.mxu0 0.0
    %563 = vmatpush1.msra.mxu0 0.0
    %564 = vmatprep.subr.mxu0 0.0
    %565 = vmatpush1.msra.mxu0 0.0
    %566 = vmatprep.subr.mxu0 0.0
    %567 = vmatpush1.msra.mxu0 0.0
    %568 = vmatprep.subr.mxu0 0.0
    %569 = vmatpush1.msra.mxu0 0.0
    %570 = vmatprep.mubr.f32.mxu0 0.0
    %571 = vmatmul.mubr.f32.gmra.mrb[0].mxu0 %v501
    %v572 = vpop.f32.mrb[0].mxu0
    %v573 = vadd.f32 %v498, %v572
    %v574 = vpop.f32.mrb[0].mxu0
    %575 = vmatprep.mubr.f32.mxu0 0.0
    %576 = vmatmul.mubr.f32.gmra.mrb[0].mxu0 %v504
    %v577 = vpop.f32.mrb[0].mxu0
    %v578 = vadd.f32 %v498, %v577
    %v579 = vpop.f32.mrb[0].mxu0
    %580 = vdwg.mxu0
    %v581 = vmax.f32 %v573, 0.0
    %v582 = vmax.f32 %v578, 0.0
    %v583 = vld [vmem:[#allocation2 + $0xa8] sm:$0xff]
    %v584 = vld [vmem:[#allocation2 + $0xb0] sm:$0xff]
    %v585 = vld [vmem:[#allocation2 + $0xb8] sm:$0xff]
    %v586 = vld [vmem:[#allocation2 + $0xc0] sm:$0xff]
    %v587 = vld [vmem:[#allocation2 + $0xc8] sm:$0x1]
    %v588 = vlaneseq
    %v589 = vshrl.u32 %v588, 7
    %v590 = vsub.s32 0, %v589
    %v591 = vrot.slane %v587, %v590
    %v593 = vsel %vm227, %v581, 0
    %v596 = vsel %vm227, %v582, 0
    %598 = vmatprep.subr.mxu0 0.0
    %599 = vmatpush1.msra.mxu0 %v583
    %600 = vmatprep.subr.mxu0 0.0
    %601 = vmatpush1.msra.mxu0 %v584
    %602 = vmatprep.subr.mxu0 0.0
    %603 = vmatpush1.msra.mxu0 %v585
    %604 = vmatprep.subr.mxu0 0.0
    %605 = vmatpush1.msra.mxu0 %v586
    %606 = vmatprep.subr.mxu0 0.0
    %607 = vmatpush1.msra.mxu0 0.0
    %608 = vmatprep.subr.mxu0 0.0
    %609 = vmatpush1.msra.mxu0 0.0
    %610 = vmatprep.subr.mxu0 0.0
    %611 = vmatpush1.msra.mxu0 0.0
    %612 = vmatprep.subr.mxu0 0.0
    %613 = vmatpush1.msra.mxu0 0.0
    %614 = vmatprep.subr.mxu0 0.0
    %615 = vmatpush1.msra.mxu0 0.0
    %616 = vmatprep.subr.mxu0 0.0
    %617 = vmatpush1.msra.mxu0 0.0
    %618 = vmatprep.subr.mxu0 0.0
    %619 = vmatpush1.msra.mxu0 0.0
    %620 = vmatprep.subr.mxu0 0.0
    %621 = vmatpush1.msra.mxu0 0.0
    %622 = vmatprep.subr.mxu0 0.0
    %623 = vmatpush1.msra.mxu0 0.0
    %624 = vmatprep.subr.mxu0 0.0
    %625 = vmatpush1.msra.mxu0 0.0
    %626 = vmatprep.subr.mxu0 0.0
    %627 = vmatpush1.msra.mxu0 0.0
    %628 = vmatprep.subr.mxu0 0.0
    %629 = vmatpush1.msra.mxu0 0.0
    %630 = vmatprep.subr.mxu0 0.0
    %631 = vmatpush1.msra.mxu0 0.0
    %632 = vmatprep.subr.mxu0 0.0
    %633 = vmatpush1.msra.mxu0 0.0
    %634 = vmatprep.subr.mxu0 0.0
    %635 = vmatpush1.msra.mxu0 0.0
    %636 = vmatprep.subr.mxu0 0.0
    %637 = vmatpush1.msra.mxu0 0.0
    %638 = vmatprep.subr.mxu0 0.0
    %639 = vmatpush1.msra.mxu0 0.0
    %640 = vmatprep.subr.mxu0 0.0
    %641 = vmatpush1.msra.mxu0 0.0
    %642 = vmatprep.subr.mxu0 0.0
    %643 = vmatpush1.msra.mxu0 0.0
    %644 = vmatprep.subr.mxu0 0.0
    %645 = vmatpush1.msra.mxu0 0.0
    %646 = vmatprep.subr.mxu0 0.0
    %647 = vmatpush1.msra.mxu0 0.0
    %648 = vmatprep.subr.mxu0 0.0
    %649 = vmatpush1.msra.mxu0 0.0
    %650 = vmatprep.subr.mxu0 0.0
    %651 = vmatpush1.msra.mxu0 0.0
    %652 = vmatprep.subr.mxu0 0.0
    %653 = vmatpush1.msra.mxu0 0.0
    %654 = vmatprep.subr.mxu0 0.0
    %655 = vmatpush1.msra.mxu0 0.0
    %656 = vmatprep.subr.mxu0 0.0
    %657 = vmatpush1.msra.mxu0 0.0
    %658 = vmatprep.subr.mxu0 0.0
    %659 = vmatpush1.msra.mxu0 0.0
    %660 = vmatprep.subr.mxu0 0.0
    %661 = vmatpush1.msra.mxu0 0.0
    %662 = vmatprep.mubr.f32.mxu0 0.0
    %663 = vmatmul.mubr.f32.gmra.mrb[0].mxu0 %v593
    %v664 = vpop.f32.mrb[0].mxu0
    %v665 = vadd.f32 %v591, %v664
    %v666 = vpop.f32.mrb[0].mxu0
    %667 = vmatprep.mubr.f32.mxu0 0.0
    %668 = vmatmul.mubr.f32.gmra.mrb[0].mxu0 %v596
    %v669 = vpop.f32.mrb[0].mxu0
    %v670 = vadd.f32 %v591, %v669
    %v671 = vpop.f32.mrb[0].mxu0
    %672 = vdwg.mxu0
    %v673 = vld [vmem:[%s2] sm:$0xff]
    %674 = vset.pattern.permute.xlu0 0
    %675 = vperm.xlu0 %674, %v673
    %v676 = vpop.permute.xlu0 %675
    %vm677 = vcmp.eq.s32.totalorder %v37, %v676
    %v678 = vsel %vm677, 1, 0
    %v679 = vcvt.s32.f32 %v678
    %v681 = vsel %vm136, %v679, 0
    %683 = vmatprep.subr.mxu0 0.0
    %684 = vmatpush1.msra.mxu0 %v665
    %685 = vmatprep.subr.mxu0 0.0
    %686 = vmatpush1.msra.mxu0 %v670
    %687 = vmatprep.subr.mxu0 0.0
    %688 = vmatpush1.msra.mxu0 0.0
    %689 = vmatprep.subr.mxu0 0.0
    %690 = vmatpush1.msra.mxu0 0.0
    %691 = vmatprep.subr.mxu0 0.0
    %692 = vmatpush1.msra.mxu0 0.0
    %693 = vmatprep.subr.mxu0 0.0
    %694 = vmatpush1.msra.mxu0 0.0
    %695 = vmatprep.subr.mxu0 0.0
    %696 = vmatpush1.msra.mxu0 0.0
    %697 = vmatprep.subr.mxu0 0.0
    %698 = vmatpush1.msra.mxu0 0.0
    %699 = vmatprep.subr.mxu0 0.0
    %700 = vmatpush1.msra.mxu0 0.0
    %701 = vmatprep.subr.mxu0 0.0
    %702 = vmatpush1.msra.mxu0 0.0
    %703 = vmatprep.subr.mxu0 0.0
    %704 = vmatpush1.msra.mxu0 0.0
    %705 = vmatprep.subr.mxu0 0.0
    %706 = vmatpush1.msra.mxu0 0.0
    %707 = vmatprep.subr.mxu0 0.0
    %708 = vmatpush1.msra.mxu0 0.0
    %709 = vmatprep.subr.mxu0 0.0
    %710 = vmatpush1.msra.mxu0 0.0
    %711 = vmatprep.subr.mxu0 0.0
    %712 = vmatpush1.msra.mxu0 0.0
    %713 = vmatprep.subr.mxu0 0.0
    %714 = vmatpush1.msra.mxu0 0.0
    %715 = vmatprep.subr.mxu0 0.0
    %716 = vmatpush1.msra.mxu0 0.0
    %717 = vmatprep.subr.mxu0 0.0
    %718 = vmatpush1.msra.mxu0 0.0
    %719 = vmatprep.subr.mxu0 0.0
    %720 = vmatpush1.msra.mxu0 0.0
    %721 = vmatprep.subr.mxu0 0.0
    %722 = vmatpush1.msra.mxu0 0.0
    %723 = vmatprep.subr.mxu0 0.0
    %724 = vmatpush1.msra.mxu0 0.0
    %725 = vmatprep.subr.mxu0 0.0
    %726 = vmatpush1.msra.mxu0 0.0
    %727 = vmatprep.subr.mxu0 0.0
    %728 = vmatpush1.msra.mxu0 0.0
    %729 = vmatprep.subr.mxu0 0.0
    %730 = vmatpush1.msra.mxu0 0.0
    %731 = vmatprep.subr.mxu0 0.0
    %732 = vmatpush1.msra.mxu0 0.0
    %733 = vmatprep.subr.mxu0 0.0
    %734 = vmatpush1.msra.mxu0 0.0
    %735 = vmatprep.subr.mxu0 0.0
    %736 = vmatpush1.msra.mxu0 0.0
    %737 = vmatprep.subr.mxu0 0.0
    %738 = vmatpush1.msra.mxu0 0.0
    %739 = vmatprep.subr.mxu0 0.0
    %740 = vmatpush1.msra.mxu0 0.0
    %741 = vmatprep.subr.mxu0 0.0
    %742 = vmatpush1.msra.mxu0 0.0
    %743 = vmatprep.subr.mxu0 0.0
    %744 = vmatpush1.msra.mxu0 0.0
    %745 = vmatprep.subr.mxu0 0.0
    %746 = vmatpush1.msra.mxu0 0.0
    %747 = vmatprep.mubr.f32.mxu0 0.0
    %748 = vmatmul.mubr.f32.gmra.mrb[0].mxu0 %v681
    %v749 = vpop.f32.mrb[0].mxu0
    %v750 = vadd.f32 0.0, %v749
    %v751 = vpop.f32.mrb[0].mxu0
    %752 = vdwg.mxu0
    %v753 = vld [vmem:[#allocation2 + $0xd0] sm:$0xff]
    %v754 = vld [vmem:[#allocation2 + $0xd8] sm:$0xff]
    %v755 = vld [vmem:[#allocation2 + $0xe0] sm:$0xff]
    %v756 = vld [vmem:[#allocation2 + $0xe8] sm:$0xff]
    %v757 = vld [vmem:[#allocation2 + $0xf0] sm:$0x1]
    %v758 = vlaneseq
    %v759 = vshrl.u32 %v758, 7
    %v760 = vsub.s32 0, %v759
    %v761 = vrot.slane %v757, %v760
    %v763 = vsel %vm227, %v750, 0
    %765 = vmatprep.subr.mxu0 0.0
    %766 = vmatpush1.msra.mxu0 %v753
    %767 = vmatprep.subr.mxu0 0.0
    %768 = vmatpush1.msra.mxu0 %v754
    %769 = vmatprep.subr.mxu0 0.0
    %770 = vmatpush1.msra.mxu0 %v755
    %771 = vmatprep.subr.mxu0 0.0
    %772 = vmatpush1.msra.mxu0 %v756
    %773 = vmatprep.subr.mxu0 0.0
    %774 = vmatpush1.msra.mxu0 0.0
    %775 = vmatprep.subr.mxu0 0.0
    %776 = vmatpush1.msra.mxu0 0.0
    %777 = vmatprep.subr.mxu0 0.0
    %778 = vmatpush1.msra.mxu0 0.0
    %779 = vmatprep.subr.mxu0 0.0
    %780 = vmatpush1.msra.mxu0 0.0
    %781 = vmatprep.subr.mxu0 0.0
    %782 = vmatpush1.msra.mxu0 0.0
    %783 = vmatprep.subr.mxu0 0.0
    %784 = vmatpush1.msra.mxu0 0.0
    %785 = vmatprep.subr.mxu0 0.0
    %786 = vmatpush1.msra.mxu0 0.0
    %787 = vmatprep.subr.mxu0 0.0
    %788 = vmatpush1.msra.mxu0 0.0
    %789 = vmatprep.subr.mxu0 0.0
    %790 = vmatpush1.msra.mxu0 0.0
    %791 = vmatprep.subr.mxu0 0.0
    %792 = vmatpush1.msra.mxu0 0.0
    %793 = vmatprep.subr.mxu0 0.0
    %794 = vmatpush1.msra.mxu0 0.0
    %795 = vmatprep.subr.mxu0 0.0
    %796 = vmatpush1.msra.mxu0 0.0
    %797 = vmatprep.subr.mxu0 0.0
    %798 = vmatpush1.msra.mxu0 0.0
    %799 = vmatprep.subr.mxu0 0.0
    %800 = vmatpush1.msra.mxu0 0.0
    %801 = vmatprep.subr.mxu0 0.0
    %802 = vmatpush1.msra.mxu0 0.0
    %803 = vmatprep.subr.mxu0 0.0
    %804 = vmatpush1.msra.mxu0 0.0
    %805 = vmatprep.subr.mxu0 0.0
    %806 = vmatpush1.msra.mxu0 0.0
    %807 = vmatprep.subr.mxu0 0.0
    %808 = vmatpush1.msra.mxu0 0.0
    %809 = vmatprep.subr.mxu0 0.0
    %810 = vmatpush1.msra.mxu0 0.0
    %811 = vmatprep.subr.mxu0 0.0
    %812 = vmatpush1.msra.mxu0 0.0
    %813 = vmatprep.subr.mxu0 0.0
    %814 = vmatpush1.msra.mxu0 0.0
    %815 = vmatprep.subr.mxu0 0.0
    %816 = vmatpush1.msra.mxu0 0.0
    %817 = vmatprep.subr.mxu0 0.0
    %818 = vmatpush1.msra.mxu0 0.0
    %819 = vmatprep.subr.mxu0 0.0
    %820 = vmatpush1.msra.mxu0 0.0
    %821 = vmatprep.subr.mxu0 0.0
    %822 = vmatpush1.msra.mxu0 0.0
    %823 = vmatprep.subr.mxu0 0.0
    %824 = vmatpush1.msra.mxu0 0.0
    %825 = vmatprep.subr.mxu0 0.0
    %826 = vmatpush1.msra.mxu0 0.0
    %827 = vmatprep.subr.mxu0 0.0
    %828 = vmatpush1.msra.mxu0 0.0
    %829 = vmatprep.mubr.f32.mxu0 0.0
    %830 = vmatmul.mubr.f32.gmra.mrb[0].mxu0 %v763
    %v831 = vpop.f32.mrb[0].mxu0
    %v832 = vadd.f32 %v761, %v831
    %v833 = vpop.f32.mrb[0].mxu0
    %834 = vdwg.mxu0
    %835 = vst [vmem:[%s4] sm:$0xff] %v832
    // Predicated region
    $region22: #{_critic_forward_impl.1} parent=1 // pred_check
      _
    $region23: #{_critic_forward_impl.1} parent=1 // pred_check_branch
      %837 = sbr.rel (0) target = $region25
    $region24: #{_critic_forward_impl.1} parent=1 // pred_region
      _
    $region25: #{_critic_forward_impl.1} parent=1 // pred_fallthru
      _
    // Predicated region
    $region26: #{_critic_forward_impl.1} parent=1 // pred_check
      _
    $region27: #{_critic_forward_impl.1} parent=1 // pred_check_branch
      %839 = sbr.rel (0) target = $region29
    $region28: #{_critic_forward_impl.1} parent=1 // pred_region
      _
    $region29: #{_critic_forward_impl.1} parent=1 // pred_fallthru
      _
    %840 = vsyncpa [#allocation3], 1

</llo_original>
